<compile_context>
chip_gen: v5e
topology: v5e:2x2
jax: 0.10.0
libtpu: 0.0.40
codegen_flags: <defaults>
</compile_context>

<pallas_src>
import math

import jax
import jax.numpy as jnp
from jax import lax
from jax.experimental import pallas as pl
from jax.experimental.pallas import tpu as pltpu

_SQRT2 = 1.4142135623730951


# ---------------------------------------------------------------------------
# Kernel
# ---------------------------------------------------------------------------
def _ffn_kernel(x_ref, w1_ref, b1_ref, w2_ref, b2_ref, o_ref, acc_ref):
    """One (M-tile, hidden-tile) grid step of the fused FFN.

    x_ref:  (tm, E) bf16    w1_ref: (E, th) bf16    b1_ref: (1, th) f32
    w2_ref: (th, E) bf16    b2_ref: (1, E)  f32
    o_ref:  (tm, E) out dtype    acc_ref: (tm, E) f32 scratch (resident over k)
    """
    k = pl.program_id(1)

    @pl.when(k == 0)
    def _init():
        # Fold b2 into the accumulator init -> added exactly once per out tile.
        acc_ref[...] = jnp.broadcast_to(b2_ref[...], acc_ref.shape)

    # l1 partial: (tm, E) @ (E, th) on the MXU, f32 accumulate.
    h = jnp.dot(x_ref[...], w1_ref[...], preferred_element_type=jnp.float32)
    h = h + b1_ref[...]

    # Exact (erf-form) GELU in f32 on the (tm, th) tile — matches torch.nn.GELU
    # default. (A tanh-approx GELU would land on the EUP slot; erf parity kept.)
    h = 0.5 * h * (1.0 + lax.erf(h * (1.0 / _SQRT2)))

    # Dropout with p=0 is the identity (eval semantics) -> no-op.
    # TODO(synk): training-mode dropout with p>0 would need pltpu.prng_* masking.

    # l2 partial: cast back to bf16 for the MXU, accumulate in f32.
    acc_ref[...] += jnp.dot(h.astype(w2_ref.dtype), w2_ref[...],
                            preferred_element_type=jnp.float32)

    @pl.when(k == pl.num_programs(1) - 1)
    def _finalize():
        o_ref[...] = acc_ref[...].astype(o_ref.dtype)


# ---------------------------------------------------------------------------
# Generation-aware tile selection
# ---------------------------------------------------------------------------
def _vmem_budget_bytes():
    """Per-generation scoped-VMEM budget (bytes), ridge-targeted tm, capacity."""
    cap = None
    try:
        info = pltpu.get_tpu_info()
        cap = getattr(info, "vmem_capacity_bytes", None)
    except Exception:
        cap = None
    if not cap:
        cap = 128 * 1024 * 1024  # assume a 128-MiB-class part if query fails
    if cap <= 80 * 1024 * 1024:
        # v7x-class: 64 MiB physical per TensorCore. Leave ~12 MiB headroom for
        # Mosaic internal scratch instead of requesting the whole chip.
        budget = min(cap - 12 * 1024 * 1024, 52 * 1024 * 1024)
        tm_target = 768    # ridge ~620 flop/byte per TC; prefer multiple of 256
    else:
        # v5e/v6e-class: 128 MiB physical. Use most of it (the old 64 MiB clamp
        # threw away the headroom needed for ridge-sized M tiles).
        budget = min(cap - 24 * 1024 * 1024, 104 * 1024 * 1024)
        tm_target = 1024   # above the ~650-700 flop/byte v6e ridge
    return max(int(budget), 24 * 1024 * 1024), tm_target, int(cap)


def _divisor_tiles(dim, align, cap=None):
    """Divisors of `dim` that are multiples of `align` and <= cap, descending."""
    hi = dim if cap is None else min(cap, dim)
    return sorted((t for t in range(align, hi + 1, align) if dim % t == 0),
                  reverse=True)


def _pick_tiles(M, E, H, out_itemsize, c_itemsize, budget, tm_target,
                tile_h_cap=None):
    """Budget-driven (tm, th) selection. Returns (tm, th, est_resident_bytes)."""

    def resid(tm, th):
        # Double-buffered pipeline buffers + resident scratch, in bytes.
        return int(
            2 * tm * E * c_itemsize            # x tile (double buffered)
            + 4 * E * th * c_itemsize          # W1 + W2 tiles (double buffered)
            + 2 * 8 * (th + E) * 4             # b1/b2 (sublane-padded, dbl buf)
            + 2 * tm * E * out_itemsize        # out tile (double buffered)
            + tm * E * 4                       # f32 accumulator scratch
            + tm * th * (4 + c_itemsize)       # f32 GELU tile + its bf16 copy
        )

    headroom = 1.15

    # Hidden-tile candidates: multiples of 128 dividing H (full H always legal).
    h_cap = H if tile_h_cap is None else min(tile_h_cap, H)
    th_cands = _divisor_tiles(H, 128, cap=h_cap)
    if H <= h_cap and H not in th_cands:
        th_cands = [H] + th_cands
    if not th_cands:
        th_cands = [H]

    # M-tile candidates: large MXU-friendly divisors first (<= ridge target and
    # <= M//2 so a dual-TC part gets >=2 parallel tiles); full M as fallback.
    tm_cands = []
    if M > 512:
        cap = min(tm_target, M // 2)
        for align in (256, 128, 32, 16):
            for t in _divisor_tiles(M, align, cap=cap):
                if t not in tm_cands:
                    tm_cands.append(t)
        tm_cands.sort(reverse=True)
    tm_cands.append(M)  # full-extent block: the choice for small M / odd shapes

    for tm in tm_cands:
        for th in th_cands:
            if resid(tm, th) * headroom <= budget:
                return tm, th, resid(tm, th)

    # Nothing fits cleanly: take the minimum-residency combination anyway.
    tm_fb, th_fb = min(tm_cands), min(th_cands)
    return tm_fb, th_fb, resid(tm_fb, th_fb)


# ---------------------------------------------------------------------------
# Wrappers
# ---------------------------------------------------------------------------
def prepare_ffn_params(w1, b1, w2, b2, compute_dtype=jnp.bfloat16):
    """Cast parameters once, outside the per-call path.

    Avoids a full extra f32->bf16 pass over both weight matrices on every
    invocation of a kernel whose bottleneck is weight streaming.
    Weights are [in, out] (= W.T of the PyTorch nn.Linear weights).
    """
    return (jnp.asarray(w1, compute_dtype),
            jnp.asarray(b1, jnp.float32).reshape(1, -1),
            jnp.asarray(w2, compute_dtype),
            jnp.asarray(b2, jnp.float32).reshape(1, -1))


def feedforward(x, w1, b1, w2, b2, *, compute_dtype=jnp.bfloat16,
                out_dtype=None, tile_h_cap=None):
    """Fused FFN: gelu(x @ w1 + b1) @ w2 + b2  (dropout p=0 is identity).

    x: [..., E];  w1: [E, H];  b1: [H] or [1, H];  w2: [H, E];  b2: [E] or [1, E].
    Pass parameters through prepare_ffn_params() to skip per-call casts.
    """
    lead = x.shape[:-1]
    embed = x.shape[-1]
    hidden = w1.shape[1]
    M = int(math.prod(lead)) if lead else 1
    out_dtype = compute_dtype if out_dtype is None else out_dtype

    # No-ops when inputs are already in the target dtypes (pre-cast params).
    x2d = jnp.asarray(x, compute_dtype).reshape(M, embed)
    w1c = jnp.asarray(w1, compute_dtype)
    w2c = jnp.asarray(w2, compute_dtype)
    b1_2d = jnp.asarray(b1, jnp.float32).reshape(1, hidden)
    b2_2d = jnp.asarray(b2, jnp.float32).reshape(1, embed)

    budget, tm_target, _cap = _vmem_budget_bytes()
    c_itemsize = jnp.dtype(compute_dtype).itemsize
    out_itemsize = jnp.dtype(out_dtype).itemsize
    tm, th, est = _pick_tiles(M, embed, hidden, out_itemsize, c_itemsize,
                              budget, tm_target, tile_h_cap=tile_h_cap)

    # Scoped-VMEM request: what we actually need (with headroom), never more
    # than the per-generation budget (which already sits below physical VMEM).
    vmem_limit = int(min(budget, max(32 * 1024 * 1024, int(est * 1.3))))

    out2d = pl.pallas_call(
        _ffn_kernel,
        out_shape=jax.ShapeDtypeStruct((M, embed), out_dtype),
        grid_spec=pltpu.PrefetchScalarGridSpec(
            num_scalar_prefetch=0,
            grid=(M // tm, hidden // th),
            in_specs=[
                pl.BlockSpec((tm, embed), lambda i, k: (i, 0)),    # x rows
                pl.BlockSpec((embed, th), lambda i, k: (0, k)),    # W1 hidden blk
                pl.BlockSpec((1, th), lambda i, k: (0, k)),        # b1 hidden blk
                pl.BlockSpec((th, embed), lambda i, k: (k, 0)),    # W2 hidden blk
                pl.BlockSpec((1, embed), lambda i, k: (0, 0)),     # b2 (const)
            ],
            out_specs=pl.BlockSpec((tm, embed), lambda i, k: (i, 0)),
            scratch_shapes=[pltpu.VMEM((tm, embed), jnp.float32)],
        ),
        compiler_params=pltpu.CompilerParams(
            dimension_semantics=("parallel", "arbitrary"),
            vmem_limit_bytes=vmem_limit),
    )(x2d, w1c, b1_2d, w2c, b2_2d)

    return out2d.reshape(*lead, embed)


# ---------------------------------------------------------------------------
# Self-test
# ---------------------------------------------------------------------------
if __name__ == "__main__":
    # Small, TPU-friendly shapes consistent with the module:
    # embed_size=128, expansion=4 -> hidden=512; batch=2, seq=8.
    embed, expansion = 128, 4
    hidden = embed * expansion
    batch, seq = 2, 8

    key = jax.random.PRNGKey(0)
    kx, kw1, kb1, kw2, kb2 = jax.random.split(key, 5)

    x = jax.random.normal(kx, (batch, seq, embed), dtype=jnp.float32)
    # Parameters stored [in, out] (= W.T of the PyTorch nn.Linear weights).
    w1 = jax.random.normal(kw1, (embed, hidden), dtype=jnp.float32) * 0.02
    b1 = jax.random.normal(kb1, (hidden,), dtype=jnp.float32) * 0.02
    w2 = jax.random.normal(kw2, (hidden, embed), dtype=jnp.float32) * 0.02
    b2 = jax.random.normal(kb2, (embed,), dtype=jnp.float32) * 0.02

    # Cast weights/biases once, outside the per-call path.
    pw1, pb1, pw2, pb2 = prepare_ffn_params(w1, b1, w2, b2)

    # tile_h_cap=256 so the hidden-reduction axis runs 2 accumulation steps
    # even at these toy sizes (exercises the pl.when init/finalize path).
    out = feedforward(x, pw1, pb1, pw2, pb2, tile_h_cap=256)
    out = jax.block_until_ready(out)

    # Pure-JAX f32 reference (same math as the PyTorch forward with p=0 dropout).
    h_ref = x.reshape(-1, embed) @ w1 + b1
    h_ref = 0.5 * h_ref * (1.0 + lax.erf(h_ref / _SQRT2))
    ref = (h_ref @ w2 + b2).reshape(batch, seq, embed)

    # bf16 MXU inputs + bf16 output vs f32 reference -> loosened tolerance.
    assert jnp.allclose(out.astype(jnp.float32), ref, atol=2e-2, rtol=2e-2), \
        "mismatch vs reference"

    print("KERNEL_OK")
</pallas_src>

<mosaic_0001>
module attributes {stable_mosaic.version = 11 : i64} {
  func.func @_ffn_kernel(%arg0: i32, %arg1: i32, %arg2: memref<16x128xbf16, #tpu.memory_space<vmem>>, %arg3: memref<128x256xbf16, #tpu.memory_space<vmem>>, %arg4: memref<1x256xf32, #tpu.memory_space<vmem>>, %arg5: memref<256x128xbf16, #tpu.memory_space<vmem>>, %arg6: memref<1x128xf32, #tpu.memory_space<vmem>>, %arg7: memref<16x128xbf16, #tpu.memory_space<vmem>>, %arg8: memref<16x128xf32, #tpu.memory_space<vmem>>) attributes {dimension_semantics = [#tpu.dimension_semantics<parallel>, #tpu.dimension_semantics<arbitrary>], iteration_bounds = array<i64: 1, 2>, scalar_prefetch = 0 : i64, scratch_operands = 1 : i64, tpu.core_type = #tpu.core_type<tc>, window_params = [{transform_indices = @transform_0, window_bounds = array<i64: 16, 128>}, {transform_indices = @transform_1, window_bounds = array<i64: 128, 256>}, {transform_indices = @transform_2, window_bounds = array<i64: 1, 256>}, {transform_indices = @transform_3, window_bounds = array<i64: 256, 128>}, {pipeline_mode = #tpu.pipeline_mode<synchronous>, transform_indices = @transform_4, window_bounds = array<i64: 1, 128>}, {transform_indices = @transform_5, window_bounds = array<i64: 16, 128>}]} {
    %c0_i32 = arith.constant 0 : i32
    %0 = arith.cmpi eq, %arg1, %c0_i32 : i32
    %1 = arith.extui %0 : i1 to i32
    %c0_i32_0 = arith.constant 0 : i32
    %2 = arith.cmpi ne, %1, %c0_i32_0 : i32
    scf.if %2 {
      %c0_17 = arith.constant 0 : index
      %c0_18 = arith.constant 0 : index
      %26 = vector.load %arg6[%c0_17, %c0_18] : memref<1x128xf32, #tpu.memory_space<vmem>>, vector<1x128xf32>
      %27 = vector.shape_cast %26 : vector<1x128xf32> to vector<1x128xf32>
      %28 = vector.broadcast %27 : vector<1x128xf32> to vector<16x128xf32>
      %c0_19 = arith.constant 0 : index
      %c0_20 = arith.constant 0 : index
      %29 = vector.load %arg8[%c0_19, %c0_20] : memref<16x128xf32, #tpu.memory_space<vmem>>, vector<16x128xf32>
      tpu.vector_store %arg8[%c0_19, %c0_20], %28 {strides = array<i32>} : memref<16x128xf32, #tpu.memory_space<vmem>>, vector<16x128xf32>,
    } else {
    }
    %c0 = arith.constant 0 : index
    %c0_1 = arith.constant 0 : index
    %3 = vector.load %arg2[%c0, %c0_1] : memref<16x128xbf16, #tpu.memory_space<vmem>>, vector<16x128xbf16>
    %c0_2 = arith.constant 0 : index
    %c0_3 = arith.constant 0 : index
    %4 = vector.load %arg3[%c0_2, %c0_3] : memref<128x256xbf16, #tpu.memory_space<vmem>>, vector<128x256xbf16>
    %cst = arith.constant dense<0.000000e+00> : vector<16x256xf32>
    %5 = tpu.matmul %3, %4, %cst {dimension_numbers = #tpu.dot_dimension_numbers<[1], [0], [0], [1], [0, 0, 1, 1], [], []>} : vector<16x128xbf16>, vector<128x256xbf16>, vector<16x256xf32> -> vector<16x256xf32>
    %c0_4 = arith.constant 0 : index
    %c0_5 = arith.constant 0 : index
    %6 = vector.load %arg4[%c0_4, %c0_5] : memref<1x256xf32, #tpu.memory_space<vmem>>, vector<1x256xf32>
    %7 = vector.broadcast %6 : vector<1x256xf32> to vector<16x256xf32>
    %8 = arith.addf %5, %7 : vector<16x256xf32>
    %cst_6 = arith.constant 5.000000e-01 : f32
    %9 = vector.broadcast %cst_6 : f32 to vector<16x256xf32>
    %10 = arith.mulf %9, %8 : vector<16x256xf32>
    %cst_7 = arith.constant 0.707106769 : f32
    %11 = vector.broadcast %cst_7 : f32 to vector<16x256xf32>
    %12 = arith.mulf %8, %11 : vector<16x256xf32>
    %13 = math.erf %12 : vector<16x256xf32>
    %cst_8 = arith.constant 1.000000e+00 : f32
    %14 = vector.broadcast %cst_8 : f32 to vector<16x256xf32>
    %15 = arith.addf %14, %13 : vector<16x256xf32>
    %16 = arith.mulf %10, %15 : vector<16x256xf32>
    %c0_9 = arith.constant 0 : index
    %c0_10 = arith.constant 0 : index
    %17 = vector.load %arg8[%c0_9, %c0_10] : memref<16x128xf32, #tpu.memory_space<vmem>>, vector<16x128xf32>
    %18 = arith.truncf %16 : vector<16x256xf32> to vector<16x256xbf16>
    %c0_11 = arith.constant 0 : index
    %c0_12 = arith.constant 0 : index
    %19 = vector.load %arg5[%c0_11, %c0_12] : memref<256x128xbf16, #tpu.memory_space<vmem>>, vector<256x128xbf16>
    %cst_13 = arith.constant dense<0.000000e+00> : vector<16x128xf32>
    %20 = tpu.matmul %18, %19, %cst_13 {dimension_numbers = #tpu.dot_dimension_numbers<[1], [0], [0], [1], [0, 0, 1, 1], [], []>} : vector<16x256xbf16>, vector<256x128xbf16>, vector<16x128xf32> -> vector<16x128xf32>
    %21 = arith.addf %17, %20 : vector<16x128xf32>
    %c0_14 = arith.constant 0 : index
    %c0_15 = arith.constant 0 : index
    %22 = vector.load %arg8[%c0_14, %c0_15] : memref<16x128xf32, #tpu.memory_space<vmem>>, vector<16x128xf32>
    tpu.vector_store %arg8[%c0_14, %c0_15], %21 {strides = array<i32>} : memref<16x128xf32, #tpu.memory_space<vmem>>, vector<16x128xf32>,
    %c1_i32 = arith.constant 1 : i32
    %23 = arith.cmpi eq, %arg1, %c1_i32 : i32
    %24 = arith.extui %23 : i1 to i32
    %c0_i32_16 = arith.constant 0 : i32
    %25 = arith.cmpi ne, %24, %c0_i32_16 : i32
    scf.if %25 {
      %c0_17 = arith.constant 0 : index
      %c0_18 = arith.constant 0 : index
      %26 = vector.load %arg8[%c0_17, %c0_18] : memref<16x128xf32, #tpu.memory_space<vmem>>, vector<16x128xf32>
      %27 = arith.truncf %26 : vector<16x128xf32> to vector<16x128xbf16>
      %c0_19 = arith.constant 0 : index
      %c0_20 = arith.constant 0 : index
      %28 = vector.load %arg7[%c0_19, %c0_20] : memref<16x128xbf16, #tpu.memory_space<vmem>>, vector<16x128xbf16>
      tpu.vector_store %arg7[%c0_19, %c0_20], %27 {strides = array<i32>} : memref<16x128xbf16, #tpu.memory_space<vmem>>, vector<16x128xbf16>,
    } else {
    }
    return
  }
  func.func @transform_0(%arg0: i32, %arg1: i32) -> (i32, i32) {
    %c0_i32 = arith.constant 0 : i32
    %c0_i32_0 = arith.constant 0 : i32
    return %arg0, %c0_i32 : i32, i32
  }
  func.func @transform_1(%arg0: i32, %arg1: i32) -> (i32, i32) {
    %c0_i32 = arith.constant 0 : i32
    %c0_i32_0 = arith.constant 0 : i32
    return %c0_i32, %arg1 : i32, i32
  }
  func.func @transform_2(%arg0: i32, %arg1: i32) -> (i32, i32) {
    %c0_i32 = arith.constant 0 : i32
    %c0_i32_0 = arith.constant 0 : i32
    return %c0_i32, %arg1 : i32, i32
  }
  func.func @transform_3(%arg0: i32, %arg1: i32) -> (i32, i32) {
    %c0_i32 = arith.constant 0 : i32
    %c0_i32_0 = arith.constant 0 : i32
    return %arg1, %c0_i32 : i32, i32
  }
  func.func @transform_4(%arg0: i32, %arg1: i32) -> (i32, i32) {
    %c0_i32 = arith.constant 0 : i32
    %c0_i32_0 = arith.constant 0 : i32
    %c0_i32_1 = arith.constant 0 : i32
    return %c0_i32, %c0_i32_0 : i32, i32
  }
  func.func @transform_5(%arg0: i32, %arg1: i32) -> (i32, i32) {
    %c0_i32 = arith.constant 0 : i32
    %c0_i32_0 = arith.constant 0 : i32
    return %arg0, %c0_i32 : i32, i32
  }
}

</mosaic_0001>

<llo_original>
// kernel: tpu_custom_call.1
$region0: #{tpu_custom_call.1}
  #allocation0 [shape = 'u32[]', space=smem, size = 0x4, offset = 0x4, fixed_abs, tag = 'smem constant byte address 0x4 - core index']
  #allocation1 [shape = 'u32[72,128]{1,0:T(1,128)}', space=vmem, size = 0x9000, scoped, tag = 'internal scratch']
  #allocation2 [shape = 'f32[16,128]{1,0:T(8,128)}', space=vmem, size = 0x2000, scoped, tag = 'scratch operand']
  %s0 = inlined_call_operand.hbm [shape: bf16[16,128], index: 0, kind: input, shape index: {}]
  %s1 = inlined_call_operand.hbm [shape: bf16[128,512], index: 1, kind: input, shape index: {}]
  %s2 = inlined_call_operand.hbm [shape: f32[1,512], index: 2, kind: input, shape index: {}]
  %s3 = inlined_call_operand.hbm [shape: bf16[512,128], index: 3, kind: input, shape index: {}]
  %s4 = inlined_call_operand.vmem [shape: f32[1,128], index: 4, kind: input, shape index: {}]
  %s5 = inlined_call_operand.hbm [shape: bf16[16,128], index: 5, kind: output, shape index: {}]
  %s6 = sld [smem:[#allocation0]]
  $region77: #{tpu_custom_call.1} parent=0
    _
  %s8 = ssub.s32 1, %s6
  %s9 = scalar_select 0, %s8, %s6
  $region1: #{tpu_custom_call.1} parent=0
    #allocation3 [shape = 'u8[4096]{0}', space=vmem, size = 0x1000, scoped, tag = 'input window, operand 0, single buffered']
    #allocation4 [shape = 's32[2]{0}', space=sflag, size = 0x8, scoped, tag = 'scoped memory for tpu_custom_call.1']
    #allocation5 [shape = 's32[2]{0}', space=sflag, size = 0x8, scoped, tag = 'scoped memory for tpu_custom_call.1']
    #allocation6 [shape = 'u8[131072]{0}', space=vmem, size = 0x20000, scoped, tag = 'input window, operand 1']
    #allocation7 [shape = 's32[2]{0}', space=sflag, size = 0x8, scoped, tag = 'scoped memory for tpu_custom_call.1']
    #allocation8 [shape = 'u8[2048]{0}', space=vmem, size = 0x800, scoped, tag = 'input window, operand 2']
    #allocation9 [shape = 'u8[131072]{0}', space=vmem, size = 0x20000, scoped, tag = 'input window, operand 3']
    #allocation10 [shape = 's32[2]{0}', space=sflag, size = 0x8, scoped, tag = 'scoped memory for tpu_custom_call.1']
    #allocation11 [shape = 'u8[4096]{0}', space=vmem, size = 0x1000, scoped, tag = 'output window, operand 0, single buffered']
    %10 = vsyncpa [#allocation4], 0
    %11 = vsyncpa [#allocation7], 0
    %s12 = scalar_lea.sflag [#allocation7], 1
    %13 = vsyncpa %s12, 0
    %14 = vsyncpa [#allocation10], 0
    %s15 = scalar_lea.sflag [#allocation10], 1
    %16 = vsyncpa %s15, 0
    %17 = vsyncpa [#allocation5], 0
    loop: start=0, step=1, limit=4
    $region2: #{tpu_custom_call.1} parent=1 // loop_pre_header
      _
    $region3: #{tpu_custom_call.1} parent=1 // loop_header
      %s19 = sphi 0, %s23
      %p20 = scmp.ge.s32.totalorder %s19, 4
      %s26 = sphi 0, %s38
      %s27 = sphi 0, %s34
      %s28 = sphi 0, %s26
      %s29 = sphi 0, %s27
      %s30 = sphi 0, %s28
      %s31 = sphi 0, %s29
      %s41 = sphi 0, %s43
      %s44 = sphi 0, %s41
      %s45 = sphi 0, %s44
      %s61 = sphi 0, %s45
      %s67 = sphi 0, %s69
      %s70 = sphi 0, %s67
      %s71 = sphi 0, %s70
      %s87 = sphi 0, %s71
      %s93 = sphi 0, %s95
      %s96 = sphi 0, %s93
      %s97 = sphi 0, %s96
      %s113 = sphi 0, %s97
      %s119 = sphi 0, %s121
      %s122 = sphi 0, %s119
      %s123 = sphi 0, %s122
      %s139 = sphi 0, %s123
      %s143 = sphi 0, %s143
      %s145 = sphi 0, %s143
      %s146 = sphi 0, %s145
      %s160 = sphi 0, %s146
      %s166 = sphi 0, %s168
      %s169 = sphi 0, %s166
      %s170 = sphi 0, %s169
      %s186 = sphi 0, %s170
    $region4: #{tpu_custom_call.1} parent=1 // loop_header_branch
      %22 = sbr.rel (%p20) target = $region8
    $region5: #{tpu_custom_call.1} parent=1 // loop_body
      %s24 = ssub.s32 %s19, 1
      %s25 = ssub.s32 %s19, 2
      %s32 = sadd.s32 1, %s27
      %p33 = scmp.ge.s32.totalorder %s32, 2
      %s34 = scalar_select %p33, 0, %s32
      %s35 = sadd.s32 1, %s26
      %s36 = scalar_select %p33, %s35, %s26
      %p37 = scmp.ge.s32.totalorder %s36, 1
      %s38 = scalar_select %p37, 0, %s36
      %s39 = ssub.s32 %s26, %s38
      %p40 = scmp.eq.s32.totalorder %s39, 0
      %s42 = sadd.s32 %s41, 1
      %s43 = scalar_select %p40, %s41, %s42
      %p46 = pneg %p40
      %p47 = scmp.eq.s32.totalorder %s19, 1
      %p48 = por %p46, %p47
      %p49 = scmp.ne.s32.totalorder %s41, %s44
      %p50 = scmp.eq.s32.totalorder %s19, 0
      %p51 = por %p49, %p50
      %p52 = scmp.ne.s32.totalorder %s41, %s44
      %p53 = scmp.eq.s32.totalorder %s24, 1
      %p54 = por %p52, %p53
      %p55 = scmp.ne.s32.totalorder %s44, %s45
      %p56 = scmp.eq.s32.totalorder %s24, 0
      %p57 = por %p55, %p56
      %p58 = scmp.ne.s32.totalorder %s44, %s45
      %p59 = scmp.eq.s32.totalorder %s25, 1
      %p60 = por %p58, %p59
      %p62 = scmp.ne.s32.totalorder %s45, %s61
      %p63 = scmp.eq.s32.totalorder %s25, 0
      %p64 = por %p62, %p63
      %s65 = ssub.s32 %s27, %s34
      %p66 = scmp.eq.s32.totalorder %s65, 0
      %s68 = sadd.s32 %s67, 1
      %s69 = scalar_select %p66, %s67, %s68
      %p72 = pneg %p66
      %p73 = scmp.eq.s32.totalorder %s19, 1
      %p74 = por %p72, %p73
      %p75 = scmp.ne.s32.totalorder %s67, %s70
      %p76 = scmp.eq.s32.totalorder %s19, 0
      %p77 = por %p75, %p76
      %p78 = scmp.ne.s32.totalorder %s67, %s70
      %p79 = scmp.eq.s32.totalorder %s24, 1
      %p80 = por %p78, %p79
      %p81 = scmp.ne.s32.totalorder %s70, %s71
      %p82 = scmp.eq.s32.totalorder %s24, 0
      %p83 = por %p81, %p82
      %p84 = scmp.ne.s32.totalorder %s70, %s71
      %p85 = scmp.eq.s32.totalorder %s25, 1
      %p86 = por %p84, %p85
      %p88 = scmp.ne.s32.totalorder %s71, %s87
      %p89 = scmp.eq.s32.totalorder %s25, 0
      %p90 = por %p88, %p89
      %s91 = ssub.s32 %s27, %s34
      %p92 = scmp.eq.s32.totalorder %s91, 0
      %s94 = sadd.s32 %s93, 1
      %s95 = scalar_select %p92, %s93, %s94
      %p98 = pneg %p92
      %p99 = scmp.eq.s32.totalorder %s19, 1
      %p100 = por %p98, %p99
      %p101 = scmp.ne.s32.totalorder %s93, %s96
      %p102 = scmp.eq.s32.totalorder %s19, 0
      %p103 = por %p101, %p102
      %p104 = scmp.ne.s32.totalorder %s93, %s96
      %p105 = scmp.eq.s32.totalorder %s24, 1
      %p106 = por %p104, %p105
      %p107 = scmp.ne.s32.totalorder %s96, %s97
      %p108 = scmp.eq.s32.totalorder %s24, 0
      %p109 = por %p107, %p108
      %p110 = scmp.ne.s32.totalorder %s96, %s97
      %p111 = scmp.eq.s32.totalorder %s25, 1
      %p112 = por %p110, %p111
      %p114 = scmp.ne.s32.totalorder %s97, %s113
      %p115 = scmp.eq.s32.totalorder %s25, 0
      %p116 = por %p114, %p115
      %s117 = ssub.s32 %s27, %s34
      %p118 = scmp.eq.s32.totalorder %s117, 0
      %s120 = sadd.s32 %s119, 1
      %s121 = scalar_select %p118, %s119, %s120
      %p124 = pneg %p118
      %p125 = scmp.eq.s32.totalorder %s19, 1
      %p126 = por %p124, %p125
      %p127 = scmp.ne.s32.totalorder %s119, %s122
      %p128 = scmp.eq.s32.totalorder %s19, 0
      %p129 = por %p127, %p128
      %p130 = scmp.ne.s32.totalorder %s119, %s122
      %p131 = scmp.eq.s32.totalorder %s24, 1
      %p132 = por %p130, %p131
      %p133 = scmp.ne.s32.totalorder %s122, %s123
      %p134 = scmp.eq.s32.totalorder %s24, 0
      %p135 = por %p133, %p134
      %p136 = scmp.ne.s32.totalorder %s122, %s123
      %p137 = scmp.eq.s32.totalorder %s25, 1
      %p138 = por %p136, %p137
      %p140 = scmp.ne.s32.totalorder %s123, %s139
      %p141 = scmp.eq.s32.totalorder %s25, 0
      %p142 = por %p140, %p141
      %s144 = sadd.s32 %s143, 1
      %p147 = scmp.eq.s32.totalorder %s19, 1
      %p148 = scmp.ne.s32.totalorder %s143, %s145
      %p149 = scmp.eq.s32.totalorder %s19, 0
      %p150 = por %p148, %p149
      %p151 = scmp.ne.s32.totalorder %s143, %s145
      %p152 = scmp.eq.s32.totalorder %s24, 1
      %p153 = por %p151, %p152
      %p154 = scmp.ne.s32.totalorder %s145, %s146
      %p155 = scmp.eq.s32.totalorder %s24, 0
      %p156 = por %p154, %p155
      %p157 = scmp.ne.s32.totalorder %s145, %s146
      %p158 = scmp.eq.s32.totalorder %s25, 1
      %p159 = por %p157, %p158
      %p161 = scmp.ne.s32.totalorder %s146, %s160
      %p162 = scmp.eq.s32.totalorder %s25, 0
      %p163 = por %p161, %p162
      %s164 = ssub.s32 %s26, %s38
      %p165 = scmp.eq.s32.totalorder %s164, 0
      %s167 = sadd.s32 %s166, 1
      %s168 = scalar_select %p165, %s166, %s167
      %p171 = pneg %p165
      %p172 = scmp.eq.s32.totalorder %s19, 1
      %p173 = por %p171, %p172
      %p174 = scmp.ne.s32.totalorder %s166, %s169
      %p175 = scmp.eq.s32.totalorder %s19, 0
      %p176 = por %p174, %p175
      %p177 = scmp.ne.s32.totalorder %s166, %s169
      %p178 = scmp.eq.s32.totalorder %s24, 1
      %p179 = por %p177, %p178
      %p180 = scmp.ne.s32.totalorder %s169, %s170
      %p181 = scmp.eq.s32.totalorder %s24, 0
      %p182 = por %p180, %p181
      %p183 = scmp.ne.s32.totalorder %s169, %s170
      %p184 = scmp.eq.s32.totalorder %s25, 1
      %p185 = por %p183, %p184
      %p187 = scmp.ne.s32.totalorder %s170, %s186
      %p188 = scmp.eq.s32.totalorder %s25, 0
      %p189 = por %p187, %p188
      %p190 = scmp.le.s32.totalorder 1, %s19
      %p191 = scmp.lt.s32.totalorder %s19, 3
      %p192 = pnand %p190, %p191
      %p193 = pneg %p192
      // Predicated region
      $region9: #{tpu_custom_call.1} parent=5 // pred_check
        _
      $region10: #{tpu_custom_call.1} parent=5 // pred_check_branch
        %195 = sbr.rel (%p192) target = $region12
      $region11: #{tpu_custom_call.1} parent=5 // pred_region
        %s196 = ssub.s32 %s19, 1
        // Predicated region
        $region13: #{tpu_custom_call.1} parent=11 // pred_check
          %p197 = pneg %p57
        $region14: #{tpu_custom_call.1} parent=11 // pred_check_branch
          %199 = sbr.rel (%p197) target = $region16
        $region15: #{tpu_custom_call.1} parent=11 // pred_region
          %s200 = smul.u32 2, %s28
          %202 = vsyncadd [#allocation4], 0
          %s203 = smul.addr %s200, 4
          %s204 = scalar_lea.hbm %s0, %s203
          %s205 = sshll.u32 %s204, 4
          %s206 = int_to_ptr.hbm [resolvable:$true] %s205
          %s207 = sshll.u32 [#allocation3], 4
          %s208 = int_to_ptr.vmem [resolvable:$true] %s207
          %213 = dma.hbm_to_vmem [thread:$0]  %s206, 128, %s208, [#allocation4], 64, 64, 4
        $region16: #{tpu_custom_call.1} parent=11 // pred_fallthru
          _
        // Predicated region
        $region17: #{tpu_custom_call.1} parent=11 // pred_check
          %p214 = pneg %p156
        $region18: #{tpu_custom_call.1} parent=11 // pred_check_branch
          %216 = sbr.rel (%p214) target = $region20
        $region19: #{tpu_custom_call.1} parent=11 // pred_region
          _
        $region20: #{tpu_custom_call.1} parent=11 // pred_fallthru
          _
      $region12: #{tpu_custom_call.1} parent=5 // pred_fallthru
        _
      %p217 = scmp.lt.s32.totalorder %s19, 2
      // Predicated region
      $region21: #{tpu_custom_call.1} parent=5 // pred_check
        %p218 = pneg %p217
      $region22: #{tpu_custom_call.1} parent=5 // pred_check_branch
        %220 = sbr.rel (%p218) target = $region24
      $region23: #{tpu_custom_call.1} parent=5 // pred_region
        // Predicated region
        $region25: #{tpu_custom_call.1} parent=23 // pred_check
          %p221 = pneg %p77
        $region26: #{tpu_custom_call.1} parent=23 // pred_check_branch
          %223 = sbr.rel (%p221) target = $region28
        $region27: #{tpu_custom_call.1} parent=23 // pred_region
          %s224 = sand.u32 %s19, 1
          %s225 = scalar_lea.sflag [#allocation7], %s224
          %s226 = sand.u32 %s67, 1
          %s227 = smul.addr %s226, 128
          %s228 = scalar_lea.vmem [#allocation6], %s227
          %s229 = smul.u32 2, %s27
          %231 = vsyncadd %s225, 0
          %s232 = smul.addr %s229, 4
          %s233 = scalar_lea.hbm %s1, %s232
          %s234 = sshll.u32 %s233, 4
          %s235 = int_to_ptr.hbm [resolvable:$true] %s234
          %s236 = sshll.u32 %s228, 4
          %s237 = int_to_ptr.vmem [resolvable:$true] %s236
          %242 = dma.hbm_to_vmem [thread:$0]  %s235, 2048, %s237, %s225, 256, 128, 8
        $region28: #{tpu_custom_call.1} parent=23 // pred_fallthru
          _
        // Predicated region
        $region29: #{tpu_custom_call.1} parent=23 // pred_check
          %p243 = pneg %p103
        $region30: #{tpu_custom_call.1} parent=23 // pred_check_branch
          %245 = sbr.rel (%p243) target = $region32
        $region31: #{tpu_custom_call.1} parent=23 // pred_region
          %s246 = sand.u32 %s19, 1
          %s247 = scalar_lea.sflag [#allocation7], %s246
          %s248 = sand.u32 %s93, 1
          %s249 = smul.addr %s248, 2
          %s250 = scalar_lea.vmem [#allocation8], %s249
          %s251 = smul.u32 2, %s27
          %253 = vsyncadd %s247, 0
          %s254 = scalar_lea.hbm %s2, %s251
          %s256 = sshll.u32 %s254, 4
          %s257 = int_to_ptr.hbm [resolvable:$true] %s256
          %s258 = sshll.u32 %s250, 4
          %s259 = int_to_ptr.vmem [resolvable:$true] %s258
          %261 = dma.hbm_to_vmem [thread:$0]  %s257, 32, %s259, %s247
        $region32: #{tpu_custom_call.1} parent=23 // pred_fallthru
          _
        // Predicated region
        $region33: #{tpu_custom_call.1} parent=23 // pred_check
          %p262 = pneg %p129
        $region34: #{tpu_custom_call.1} parent=23 // pred_check_branch
          %264 = sbr.rel (%p262) target = $region36
        $region35: #{tpu_custom_call.1} parent=23 // pred_region
          %s265 = sand.u32 %s119, 1
          %s266 = scalar_lea.sflag [#allocation10], %s265
          %s267 = sand.u32 %s119, 1
          %s268 = smul.addr %s267, 128
          %s269 = scalar_lea.vmem [#allocation9], %s268
          %s270 = smul.u32 32, %s27
          %272 = vsyncadd %s266, 0
          %s273 = smul.addr %s270, 4
          %s274 = scalar_lea.hbm %s3, %s273
          %s275 = sshll.u32 %s274, 4
          %s276 = int_to_ptr.hbm [resolvable:$true] %s275
          %s277 = sshll.u32 %s269, 4
          %s278 = int_to_ptr.vmem [resolvable:$true] %s277
          %283 = dma.hbm_to_vmem [thread:$0]  %s276, 2048, %s278, %s266, 64, 64, 4
        $region36: #{tpu_custom_call.1} parent=23 // pred_fallthru
          _
      $region24: #{tpu_custom_call.1} parent=5 // pred_fallthru
        _
      %p284 = scmp.le.s32.totalorder 1, %s19
      %p285 = scmp.lt.s32.totalorder %s19, 3
      %p286 = pnand %p284, %p285
      %p287 = pneg %p286
      // Predicated region
      $region37: #{tpu_custom_call.1} parent=5 // pred_check
        _
      $region38: #{tpu_custom_call.1} parent=5 // pred_check_branch
        %289 = sbr.rel (%p286) target = $region40
      $region39: #{tpu_custom_call.1} parent=5 // pred_region
        %s290 = ssub.s32 %s19, 1
        // Predicated region
        $region41: #{tpu_custom_call.1} parent=39 // pred_check
          %p291 = pneg %p57
        $region42: #{tpu_custom_call.1} parent=39 // pred_check_branch
          %293 = sbr.rel (%p291) target = $region44
        $region43: #{tpu_custom_call.1} parent=39 // pred_region
          %295 = dma.done [#allocation4], 128
        $region44: #{tpu_custom_call.1} parent=39 // pred_fallthru
          _
        %s296 = sand.u32 %s24, 1
        %s297 = scalar_lea.sflag [#allocation7], %s296
        %s298 = sand.u32 %s70, 1
        %s299 = smul.addr %s298, 128
        %s300 = scalar_lea.vmem [#allocation6], %s299
        // Predicated region
        $region45: #{tpu_custom_call.1} parent=39 // pred_check
          %p301 = pneg %p83
        $region46: #{tpu_custom_call.1} parent=39 // pred_check_branch
          %303 = sbr.rel (%p301) target = $region48
        $region47: #{tpu_custom_call.1} parent=39 // pred_region
          %305 = dma.done %s297, 2048
        $region48: #{tpu_custom_call.1} parent=39 // pred_fallthru
          _
        %s306 = sand.u32 %s24, 1
        %s307 = scalar_lea.sflag [#allocation7], %s306
        %s308 = sand.u32 %s96, 1
        %s309 = smul.addr %s308, 2
        %s310 = scalar_lea.vmem [#allocation8], %s309
        // Predicated region
        $region49: #{tpu_custom_call.1} parent=39 // pred_check
          %p311 = pneg %p109
        $region50: #{tpu_custom_call.1} parent=39 // pred_check_branch
          %313 = sbr.rel (%p311) target = $region52
        $region51: #{tpu_custom_call.1} parent=39 // pred_region
          %315 = dma.done %s307, 32
        $region52: #{tpu_custom_call.1} parent=39 // pred_fallthru
          _
        %s316 = sand.u32 %s122, 1
        %s317 = scalar_lea.sflag [#allocation10], %s316
        %s318 = sand.u32 %s122, 1
        %s319 = smul.addr %s318, 128
        %s320 = scalar_lea.vmem [#allocation9], %s319
        // Predicated region
        $region53: #{tpu_custom_call.1} parent=39 // pred_check
          %p321 = pneg %p135
        $region54: #{tpu_custom_call.1} parent=39 // pred_check_branch
          %323 = sbr.rel (%p321) target = $region56
        $region55: #{tpu_custom_call.1} parent=39 // pred_region
          %325 = dma.done %s317, 2048
        $region56: #{tpu_custom_call.1} parent=39 // pred_fallthru
          _
        %p326 = pneg %p57
        %p327 = pneg %p54
        %s328 = sand.u32 %s24, 1
        %s329 = scalar_lea.sflag [#allocation7], %s328
        %s330 = sand.u32 %s70, 1
        %s331 = smul.addr %s330, 128
        %s332 = scalar_lea.vmem [#allocation6], %s331
        %p333 = pneg %p83
        %p334 = pneg %p80
        %s335 = sand.u32 %s24, 1
        %s336 = scalar_lea.sflag [#allocation7], %s335
        %s337 = sand.u32 %s96, 1
        %s338 = smul.addr %s337, 2
        %s339 = scalar_lea.vmem [#allocation8], %s338
        %p340 = pneg %p109
        %p341 = pneg %p106
        %s342 = sand.u32 %s122, 1
        %s343 = scalar_lea.sflag [#allocation10], %s342
        %s344 = sand.u32 %s122, 1
        %s345 = smul.addr %s344, 128
        %s346 = scalar_lea.vmem [#allocation9], %s345
        %p347 = pneg %p135
        %p348 = pneg %p132
        %p349 = pneg %p156
        %p350 = pneg %p153
        %p351 = pneg %p182
        %p352 = pneg %p179
        %s353 = smul.u32 2, %s28
        %s354 = smul.u32 2, %s29
        %s355 = smul.u32 2, %s29
        %s356 = smul.u32 32, %s29
        %s357 = smul.u32 2, %s28
        %p358 = scmp.eq.s32.totalorder %s29, 0
        // Predicated region
        $region57: #{tpu_custom_call.1} parent=39 // pred_check
          %p359 = pneg %p358
        $region58: #{tpu_custom_call.1} parent=39 // pred_check_branch
          %361 = sbr.rel (%p359) target = $region60
        $region59: #{tpu_custom_call.1} parent=39 // pred_region
          %v362 = vld [vmem:[%s4] sm:$0x1]
          %v364 = vperm.slane %v362, 0
          %366 = vst [vmem:[#allocation2] sm:$0xff] %v364
          %367 = vst [vmem:[#allocation2 + $0x8] sm:$0xff] %v364
        $region60: #{tpu_custom_call.1} parent=39 // pred_fallthru
          _
        %v368 = vld [vmem:[#allocation3] sm:$0xf]
        %v369 = vld [vmem:[#allocation3 + $0x4] sm:$0xf]
        %v370 = vld [vmem:[%s300] sm:$0xff]
        %v371 = vld [vmem:[%s300 + $0x8] sm:$0xff]
        %v372 = vld [vmem:[%s300 + $0x10] sm:$0xff]
        %v373 = vld [vmem:[%s300 + $0x18] sm:$0xff]
        %v374 = vld [vmem:[%s300 + $0x20] sm:$0xff]
        %v375 = vld [vmem:[%s300 + $0x28] sm:$0xff]
        %v376 = vld [vmem:[%s300 + $0x30] sm:$0xff]
        %v377 = vld [vmem:[%s300 + $0x38] sm:$0xff]
        %v378 = vld [vmem:[%s300 + $0x40] sm:$0xff]
        %v379 = vld [vmem:[%s300 + $0x48] sm:$0xff]
        %v380 = vld [vmem:[%s300 + $0x50] sm:$0xff]
        %v381 = vld [vmem:[%s300 + $0x58] sm:$0xff]
        %v382 = vld [vmem:[%s300 + $0x60] sm:$0xff]
        %v383 = vld [vmem:[%s300 + $0x68] sm:$0xff]
        %v384 = vld [vmem:[%s300 + $0x70] sm:$0xff]
        %v385 = vld [vmem:[%s300 + $0x78] sm:$0xff]
        %v386 = vld [vmem:[%s310] sm:$0x3]
        %v388 = vperm.slane %v386, 0
        %v389 = vperm.slane %v386, 1
        %v394 = vunpack.c.l.b16 %v368
        %v395 = vunpack.c.l.b16 %v369
        %v396 = vpack.c.b16 %v395, %v394
        %v414 = vunpack.c.l.b16 %v370
        %v415 = vunpack.c.h.b16 %v370
        %v416 = vunpack.c.l.b16 %v371
        %v417 = vunpack.c.h.b16 %v371
        %v418 = vunpack.c.l.b16 %v372
        %v419 = vunpack.c.h.b16 %v372
        %v420 = vunpack.c.l.b16 %v373
        %v421 = vunpack.c.h.b16 %v373
        %v422 = vunpack.c.l.b16 %v374
        %v423 = vunpack.c.h.b16 %v374
        %v424 = vunpack.c.l.b16 %v375
        %v425 = vunpack.c.h.b16 %v375
        %v426 = vunpack.c.l.b16 %v376
        %v427 = vunpack.c.h.b16 %v376
        %v428 = vunpack.c.l.b16 %v377
        %v429 = vunpack.c.h.b16 %v377
        %v430 = vunpack.c.l.b16 %v378
        %v431 = vunpack.c.h.b16 %v378
        %v432 = vunpack.c.l.b16 %v379
        %v433 = vunpack.c.h.b16 %v379
        %v434 = vunpack.c.l.b16 %v380
        %v435 = vunpack.c.h.b16 %v380
        %v436 = vunpack.c.l.b16 %v381
        %v437 = vunpack.c.h.b16 %v381
        %v438 = vunpack.c.l.b16 %v382
        %v439 = vunpack.c.h.b16 %v382
        %v440 = vunpack.c.l.b16 %v383
        %v441 = vunpack.c.h.b16 %v383
        %v442 = vunpack.c.l.b16 %v384
        %v443 = vunpack.c.h.b16 %v384
        %v444 = vunpack.c.l.b16 %v385
        %v445 = vunpack.c.h.b16 %v385
        %v446 = vpack.c.b16 %v416, %v414
        %v447 = vpack.c.b16 %v417, %v415
        %v448 = vpack.c.b16 %v420, %v418
        %v449 = vpack.c.b16 %v421, %v419
        %v450 = vpack.c.b16 %v424, %v422
        %v451 = vpack.c.b16 %v425, %v423
        %v452 = vpack.c.b16 %v428, %v426
        %v453 = vpack.c.b16 %v429, %v427
        %v454 = vpack.c.b16 %v432, %v430
        %v455 = vpack.c.b16 %v433, %v431
        %v456 = vpack.c.b16 %v436, %v434
        %v457 = vpack.c.b16 %v437, %v435
        %v458 = vpack.c.b16 %v440, %v438
        %v459 = vpack.c.b16 %v441, %v439
        %v460 = vpack.c.b16 %v444, %v442
        %v461 = vpack.c.b16 %v445, %v443
        %478 = vmatpush.bf16.msra.mxu0 %v460
        %479 = vmatpush.bf16.msra.mxu0 %v458
        %480 = vmatpush.bf16.msra.mxu0 %v456
        %481 = vmatpush.bf16.msra.mxu0 %v454
        %482 = vmatpush.bf16.msra.mxu0 %v452
        %483 = vmatpush.bf16.msra.mxu0 %v450
        %484 = vmatpush.bf16.msra.mxu0 %v448
        %485 = vmatpush.bf16.msra.mxu0 %v446
        %486 = vmatmul.bf16.gmra.mxu0 %v396
        %v487 = vpop.f32.mrf.mxu0
        %v488 = vadd.f32 %v388, %v487
        %v489 = vpop.f32.mrf.mxu0
        %v490 = vadd.f32 %v388, %v489
        %491 = vdwg.mxu0
        %492 = vmatpush.bf16.msra.mxu0 %v461
        %493 = vmatpush.bf16.msra.mxu0 %v459
        %494 = vmatpush.bf16.msra.mxu0 %v457
        %495 = vmatpush.bf16.msra.mxu0 %v455
        %496 = vmatpush.bf16.msra.mxu0 %v453
        %497 = vmatpush.bf16.msra.mxu0 %v451
        %498 = vmatpush.bf16.msra.mxu0 %v449
        %499 = vmatpush.bf16.msra.mxu0 %v447
        %500 = vmatmul.bf16.gmra.mxu0 %v396
        %v501 = vpop.f32.mrf.mxu0
        %v502 = vadd.f32 %v389, %v501
        %v503 = vpop.f32.mrf.mxu0
        %v504 = vadd.f32 %v389, %v503
        %505 = vdwg.mxu0
        %v506 = vmul.f32 %v488, 0.5
        %v507 = vmul.f32 %v502, 0.5
        %v508 = vmul.f32 %v490, 0.5
        %v509 = vmul.f32 %v504, 0.5
        %v510 = vmul.f32 %v488, 0.70710677
        %v511 = vmul.f32 %v502, 0.70710677
        %v512 = vmul.f32 %v490, 0.70710677
        %v513 = vmul.f32 %v504, 0.70710677
        %v514 = vmul.f32 %v510, %v510
        %v515 = vmin.f32 16.0, %v514
        %v516 = vmul.f32 %v515, 2.1237322e-06
        %v517 = vadd.f32 %v516, 0.00028619796
        %v518 = vmul.f32 %v515, %v517
        %v519 = vadd.f32 %v518, 0.0036580483
        %v520 = vmul.f32 %v515, %v519
        %v521 = vadd.f32 %v520, 0.05243302
        %v522 = vmul.f32 %v515, %v521
        %v523 = vadd.f32 %v522, 0.18741608
        %v524 = vmul.f32 %v515, %v523
        %v525 = vadd.f32 %v524, 1.1283791
        %v526 = vmul.f32 %v510, %v525
        %v527 = vmul.f32 %v515, 3.8918573e-05
        %v528 = vadd.f32 %v527, 0.001143296
        %v529 = vmul.f32 %v515, %v528
        %v530 = vadd.f32 %v529, 0.014752088
        %v531 = vmul.f32 %v515, %v530
        %v532 = vadd.f32 %v531, 0.112945676
        %v533 = vmul.f32 %v515, %v532
        %v534 = vadd.f32 %v533, 0.4994258
        %v535 = vmul.f32 %v515, %v534
        %v536 = vadd.f32 %v535, 1.0
        %v537 = vrcp.pop %v536
        %v538 = vmul.f32 %v536, %v537
        %v539 = vsub.f32 1.0, %v538
        %v540 = vmul.f32 %v537, %v539
        %v541 = vadd.f32 %v537, %v540
        %vm542 = vweird.f32 %v536
        %vm543 = vweird.f32 %v537
        %vm544 = vmor %vm542, %vm543
        %v545 = vsel %vm544, %v537, %v541
        %v546 = vand.u32 2147483647, %v536
        %vm547 = vcmp.eq.f32.partialorder %v546, 8.507059e+37
        %v548 = vand.u32 %v536, 2147483648
        %v549 = vor.u32 1.1754944e-38, %v548
        %v550 = vsel %vm547, %v549, %v545
        %v551 = vmul.f32 %v526, %v550
        %v552 = vmin.f32 %v551, 1.0
        %v553 = vmax.f32 %v552, -1.0
        %v554 = vmul.f32 %v511, %v511
        %v555 = vmin.f32 16.0, %v554
        %v556 = vmul.f32 %v555, 2.1237322e-06
        %v557 = vadd.f32 %v556, 0.00028619796
        %v558 = vmul.f32 %v555, %v557
        %v559 = vadd.f32 %v558, 0.0036580483
        %v560 = vmul.f32 %v555, %v559
        %v561 = vadd.f32 %v560, 0.05243302
        %v562 = vmul.f32 %v555, %v561
        %v563 = vadd.f32 %v562, 0.18741608
        %v564 = vmul.f32 %v555, %v563
        %v565 = vadd.f32 %v564, 1.1283791
        %v566 = vmul.f32 %v511, %v565
        %v567 = vmul.f32 %v555, 3.8918573e-05
        %v568 = vadd.f32 %v567, 0.001143296
        %v569 = vmul.f32 %v555, %v568
        %v570 = vadd.f32 %v569, 0.014752088
        %v571 = vmul.f32 %v555, %v570
        %v572 = vadd.f32 %v571, 0.112945676
        %v573 = vmul.f32 %v555, %v572
        %v574 = vadd.f32 %v573, 0.4994258
        %v575 = vmul.f32 %v555, %v574
        %v576 = vadd.f32 %v575, 1.0
        %v577 = vrcp.pop %v576
        %v578 = vmul.f32 %v576, %v577
        %v579 = vsub.f32 1.0, %v578
        %v580 = vmul.f32 %v577, %v579
        %v581 = vadd.f32 %v577, %v580
        %vm582 = vweird.f32 %v576
        %vm583 = vweird.f32 %v577
        %vm584 = vmor %vm582, %vm583
        %v585 = vsel %vm584, %v577, %v581
        %v586 = vand.u32 2147483647, %v576
        %vm587 = vcmp.eq.f32.partialorder %v586, 8.507059e+37
        %v588 = vand.u32 %v576, 2147483648
        %v589 = vor.u32 1.1754944e-38, %v588
        %v590 = vsel %vm587, %v589, %v585
        %v591 = vmul.f32 %v566, %v590
        %v592 = vmin.f32 %v591, 1.0
        %v593 = vmax.f32 %v592, -1.0
        %v594 = vmul.f32 %v512, %v512
        %v595 = vmin.f32 16.0, %v594
        %v596 = vmul.f32 %v595, 2.1237322e-06
        %v597 = vadd.f32 %v596, 0.00028619796
        %v598 = vmul.f32 %v595, %v597
        %v599 = vadd.f32 %v598, 0.0036580483
        %v600 = vmul.f32 %v595, %v599
        %v601 = vadd.f32 %v600, 0.05243302
        %v602 = vmul.f32 %v595, %v601
        %v603 = vadd.f32 %v602, 0.18741608
        %v604 = vmul.f32 %v595, %v603
        %v605 = vadd.f32 %v604, 1.1283791
        %v606 = vmul.f32 %v512, %v605
        %v607 = vmul.f32 %v595, 3.8918573e-05
        %v608 = vadd.f32 %v607, 0.001143296
        %v609 = vmul.f32 %v595, %v608
        %v610 = vadd.f32 %v609, 0.014752088
        %v611 = vmul.f32 %v595, %v610
        %v612 = vadd.f32 %v611, 0.112945676
        %v613 = vmul.f32 %v595, %v612
        %v614 = vadd.f32 %v613, 0.4994258
        %v615 = vmul.f32 %v595, %v614
        %v616 = vadd.f32 %v615, 1.0
        %v617 = vrcp.pop %v616
        %v618 = vmul.f32 %v616, %v617
        %v619 = vsub.f32 1.0, %v618
        %v620 = vmul.f32 %v617, %v619
        %v621 = vadd.f32 %v617, %v620
        %vm622 = vweird.f32 %v616
        %vm623 = vweird.f32 %v617
        %vm624 = vmor %vm622, %vm623
        %v625 = vsel %vm624, %v617, %v621
        %v626 = vand.u32 2147483647, %v616
        %vm627 = vcmp.eq.f32.partialorder %v626, 8.507059e+37
        %v628 = vand.u32 %v616, 2147483648
        %v629 = vor.u32 1.1754944e-38, %v628
        %v630 = vsel %vm627, %v629, %v625
        %v631 = vmul.f32 %v606, %v630
        %v632 = vmin.f32 %v631, 1.0
        %v633 = vmax.f32 %v632, -1.0
        %v634 = vmul.f32 %v513, %v513
        %v635 = vmin.f32 16.0, %v634
        %v636 = vmul.f32 %v635, 2.1237322e-06
        %v637 = vadd.f32 %v636, 0.00028619796
        %v638 = vmul.f32 %v635, %v637
        %v639 = vadd.f32 %v638, 0.0036580483
        %v640 = vmul.f32 %v635, %v639
        %v641 = vadd.f32 %v640, 0.05243302
        %v642 = vmul.f32 %v635, %v641
        %v643 = vadd.f32 %v642, 0.18741608
        %v644 = vmul.f32 %v635, %v643
        %v645 = vadd.f32 %v644, 1.1283791
        %v646 = vmul.f32 %v513, %v645
        %v647 = vmul.f32 %v635, 3.8918573e-05
        %v648 = vadd.f32 %v647, 0.001143296
        %v649 = vmul.f32 %v635, %v648
        %v650 = vadd.f32 %v649, 0.014752088
        %v651 = vmul.f32 %v635, %v650
        %v652 = vadd.f32 %v651, 0.112945676
        %v653 = vmul.f32 %v635, %v652
        %v654 = vadd.f32 %v653, 0.4994258
        %v655 = vmul.f32 %v635, %v654
        %v656 = vadd.f32 %v655, 1.0
        %v657 = vrcp.pop %v656
        %v658 = vmul.f32 %v656, %v657
        %v659 = vsub.f32 1.0, %v658
        %v660 = vmul.f32 %v657, %v659
        %v661 = vadd.f32 %v657, %v660
        %vm662 = vweird.f32 %v656
        %vm663 = vweird.f32 %v657
        %vm664 = vmor %vm662, %vm663
        %v665 = vsel %vm664, %v657, %v661
        %v666 = vand.u32 2147483647, %v656
        %vm667 = vcmp.eq.f32.partialorder %v666, 8.507059e+37
        %v668 = vand.u32 %v656, 2147483648
        %v669 = vor.u32 1.1754944e-38, %v668
        %v670 = vsel %vm667, %v669, %v665
        %v671 = vmul.f32 %v646, %v670
        %v672 = vmin.f32 %v671, 1.0
        %v673 = vmax.f32 %v672, -1.0
        %v674 = vadd.f32 %v553, 1.0
        %v675 = vadd.f32 %v593, 1.0
        %v676 = vadd.f32 %v633, 1.0
        %v677 = vadd.f32 %v673, 1.0
        %v678 = vmul.f32 %v506, %v674
        %v679 = vmul.f32 %v507, %v675
        %v680 = vmul.f32 %v508, %v676
        %v681 = vmul.f32 %v509, %v677
        %v682 = vld [vmem:[#allocation2] sm:$0xff]
        %v683 = vld [vmem:[#allocation2 + $0x8] sm:$0xff]
        %v684 = vpack.c.bf16 %v680, %v678
        %v685 = vpack.c.bf16 %v681, %v679
        %v686 = vld [vmem:[%s320] sm:$0xf]
        %v687 = vld [vmem:[%s320 + $0x4] sm:$0xf]
        %v688 = vld [vmem:[%s320 + $0x8] sm:$0xf]
        %v689 = vld [vmem:[%s320 + $0xc] sm:$0xf]
        %v690 = vld [vmem:[%s320 + $0x10] sm:$0xf]
        %v691 = vld [vmem:[%s320 + $0x14] sm:$0xf]
        %v692 = vld [vmem:[%s320 + $0x18] sm:$0xf]
        %v693 = vld [vmem:[%s320 + $0x1c] sm:$0xf]
        %v694 = vld [vmem:[%s320 + $0x20] sm:$0xf]
        %v695 = vld [vmem:[%s320 + $0x24] sm:$0xf]
        %v696 = vld [vmem:[%s320 + $0x28] sm:$0xf]
        %v697 = vld [vmem:[%s320 + $0x2c] sm:$0xf]
        %v698 = vld [vmem:[%s320 + $0x30] sm:$0xf]
        %v699 = vld [vmem:[%s320 + $0x34] sm:$0xf]
        %v700 = vld [vmem:[%s320 + $0x38] sm:$0xf]
        %v701 = vld [vmem:[%s320 + $0x3c] sm:$0xf]
        %v702 = vld [vmem:[%s320 + $0x40] sm:$0xf]
        %v703 = vld [vmem:[%s320 + $0x44] sm:$0xf]
        %v704 = vld [vmem:[%s320 + $0x48] sm:$0xf]
        %v705 = vld [vmem:[%s320 + $0x4c] sm:$0xf]
        %v706 = vld [vmem:[%s320 + $0x50] sm:$0xf]
        %v707 = vld [vmem:[%s320 + $0x54] sm:$0xf]
        %v708 = vld [vmem:[%s320 + $0x58] sm:$0xf]
        %v709 = vld [vmem:[%s320 + $0x5c] sm:$0xf]
        %v710 = vld [vmem:[%s320 + $0x60] sm:$0xf]
        %v711 = vld [vmem:[%s320 + $0x64] sm:$0xf]
        %v712 = vld [vmem:[%s320 + $0x68] sm:$0xf]
        %v713 = vld [vmem:[%s320 + $0x6c] sm:$0xf]
        %v714 = vld [vmem:[%s320 + $0x70] sm:$0xf]
        %v715 = vld [vmem:[%s320 + $0x74] sm:$0xf]
        %v716 = vld [vmem:[%s320 + $0x78] sm:$0xf]
        %v717 = vld [vmem:[%s320 + $0x7c] sm:$0xf]
        %v750 = vunpack.c.l.b16 %v686
        %v751 = vunpack.c.l.b16 %v687
        %v752 = vunpack.c.l.b16 %v688
        %v753 = vunpack.c.l.b16 %v689
        %v754 = vunpack.c.l.b16 %v690
        %v755 = vunpack.c.l.b16 %v691
        %v756 = vunpack.c.l.b16 %v692
        %v757 = vunpack.c.l.b16 %v693
        %v758 = vunpack.c.l.b16 %v694
        %v759 = vunpack.c.l.b16 %v695
        %v760 = vunpack.c.l.b16 %v696
        %v761 = vunpack.c.l.b16 %v697
        %v762 = vunpack.c.l.b16 %v698
        %v763 = vunpack.c.l.b16 %v699
        %v764 = vunpack.c.l.b16 %v700
        %v765 = vunpack.c.l.b16 %v701
        %v766 = vunpack.c.l.b16 %v702
        %v767 = vunpack.c.l.b16 %v703
        %v768 = vunpack.c.l.b16 %v704
        %v769 = vunpack.c.l.b16 %v705
        %v770 = vunpack.c.l.b16 %v706
        %v771 = vunpack.c.l.b16 %v707
        %v772 = vunpack.c.l.b16 %v708
        %v773 = vunpack.c.l.b16 %v709
        %v774 = vunpack.c.l.b16 %v710
        %v775 = vunpack.c.l.b16 %v711
        %v776 = vunpack.c.l.b16 %v712
        %v777 = vunpack.c.l.b16 %v713
        %v778 = vunpack.c.l.b16 %v714
        %v779 = vunpack.c.l.b16 %v715
        %v780 = vunpack.c.l.b16 %v716
        %v781 = vunpack.c.l.b16 %v717
        %v782 = vpack.c.b16 %v751, %v750
        %v783 = vpack.c.b16 %v753, %v752
        %v784 = vpack.c.b16 %v755, %v754
        %v785 = vpack.c.b16 %v757, %v756
        %v786 = vpack.c.b16 %v759, %v758
        %v787 = vpack.c.b16 %v761, %v760
        %v788 = vpack.c.b16 %v763, %v762
        %v789 = vpack.c.b16 %v765, %v764
        %v790 = vpack.c.b16 %v767, %v766
        %v791 = vpack.c.b16 %v769, %v768
        %v792 = vpack.c.b16 %v771, %v770
        %v793 = vpack.c.b16 %v773, %v772
        %v794 = vpack.c.b16 %v775, %v774
        %v795 = vpack.c.b16 %v777, %v776
        %v796 = vpack.c.b16 %v779, %v778
        %v797 = vpack.c.b16 %v781, %v780
        %814 = vmatpush.bf16.msra.mxu0 %v789
        %815 = vmatpush.bf16.msra.mxu0 %v788
        %816 = vmatpush.bf16.msra.mxu0 %v787
        %817 = vmatpush.bf16.msra.mxu0 %v786
        %818 = vmatpush.bf16.msra.mxu0 %v785
        %819 = vmatpush.bf16.msra.mxu0 %v784
        %820 = vmatpush.bf16.msra.mxu0 %v783
        %821 = vmatpush.bf16.msra.mxu0 %v782
        %822 = vmatmul.bf16.gmra.mxu0 %v684
        %v823 = vpop.f32.mrf.mxu0
        %v824 = vadd.f32 0.0, %v823
        %v825 = vpop.f32.mrf.mxu0
        %v826 = vadd.f32 0.0, %v825
        %827 = vdwg.mxu0
        %828 = vmatpush.bf16.msra.mxu0 %v797
        %829 = vmatpush.bf16.msra.mxu0 %v796
        %830 = vmatpush.bf16.msra.mxu0 %v795
        %831 = vmatpush.bf16.msra.mxu0 %v794
        %832 = vmatpush.bf16.msra.mxu0 %v793
        %833 = vmatpush.bf16.msra.mxu0 %v792
        %834 = vmatpush.bf16.msra.mxu0 %v791
        %835 = vmatpush.bf16.msra.mxu0 %v790
        %836 = vmatmul.bf16.gmra.mxu0 %v685
        %v837 = vpop.f32.mrf.mxu0
        %v838 = vadd.f32 %v824, %v837
        %v839 = vpop.f32.mrf.mxu0
        %v840 = vadd.f32 %v826, %v839
        %841 = vdwg.mxu0
        %v842 = vadd.f32 %v682, %v838
        %v843 = vadd.f32 %v683, %v840
        %844 = vst [vmem:[#allocation2] sm:$0xff] %v842
        %845 = vst [vmem:[#allocation2 + $0x8] sm:$0xff] %v843
        %p846 = scmp.eq.s32.totalorder %s29, 1
        // Predicated region
        $region61: #{tpu_custom_call.1} parent=39 // pred_check
          %p847 = pneg %p846
        $region62: #{tpu_custom_call.1} parent=39 // pred_check_branch
          %849 = sbr.rel (%p847) target = $region64
        $region63: #{tpu_custom_call.1} parent=39 // pred_region
          %v850 = vld [vmem:[#allocation2] sm:$0xff]
          %v851 = vld [vmem:[#allocation2 + $0x8] sm:$0xff]
          %v852 = vpack.c.bf16 %v850, %v850
          %v853 = vpack.c.bf16 %v851, %v851
          %854 = vst [vmem:[#allocation11] sm:$0xf] %v852
          %855 = vst [vmem:[#allocation11 + $0x4] sm:$0xf] %v853
        $region64: #{tpu_custom_call.1} parent=39 // pred_fallthru
          _
        // Predicated region
        $region65: #{tpu_custom_call.1} parent=39 // pred_check
          %p856 = pneg %p179
        $region66: #{tpu_custom_call.1} parent=39 // pred_check_branch
          %858 = sbr.rel (%p856) target = $region68
        $region67: #{tpu_custom_call.1} parent=39 // pred_region
          %s859 = smul.u32 2, %s28
          %861 = vsyncadd [#allocation5], 0
          %s862 = smul.addr %s859, 4
          %s863 = scalar_lea.hbm %s5, %s862
          %s864 = sshll.u32 [#allocation11], 4
          %s865 = int_to_ptr.vmem [resolvable:$true] %s864
          %s866 = sshll.u32 %s863, 4
          %s867 = int_to_ptr.hbm [resolvable:$true] %s866
          %872 = dma.vmem_to_hbm [thread:$0]  %s865, 128, %s867, [#allocation5], 64, 64, 4
        $region68: #{tpu_custom_call.1} parent=39 // pred_fallthru
          _
        // Predicated region
        $region69: #{tpu_custom_call.1} parent=39 // pred_check
          %p873 = pneg %p179
        $region70: #{tpu_custom_call.1} parent=39 // pred_check_branch
          %875 = sbr.rel (%p873) target = $region72
        $region71: #{tpu_custom_call.1} parent=39 // pred_region
          %877 = dma.done [#allocation5], 128
        $region72: #{tpu_custom_call.1} parent=39 // pred_fallthru
          _
      $region40: #{tpu_custom_call.1} parent=5 // pred_fallthru
        _
      %p878 = scmp.le.s32.totalorder 2, %s19
      // Predicated region
      $region73: #{tpu_custom_call.1} parent=5 // pred_check
        %p879 = pneg %p878
      $region74: #{tpu_custom_call.1} parent=5 // pred_check_branch
        %881 = sbr.rel (%p879) target = $region76
      $region75: #{tpu_custom_call.1} parent=5 // pred_region
        %s882 = ssub.s32 %s19, 2
      $region76: #{tpu_custom_call.1} parent=5 // pred_fallthru
        _
    $region6: #{tpu_custom_call.1} parent=1 // loop_footer
      %s23 = sadd.s32 1, %s19
    $region7: #{tpu_custom_call.1} parent=1 // loop_footer_branch
      %18 = sbr.rel target = $region3
    $region8: #{tpu_custom_call.1} parent=1 // loop_exit
      _
    %883 = vsyncpa [#allocation4], 1
    %s884 = scalar_lea.sflag [#allocation4], 1
    %885 = vsyncpa %s884, 1
    %886 = vsyncpa [#allocation7], 1
    %s887 = scalar_lea.sflag [#allocation7], 1
    %888 = vsyncpa %s887, 1
    %889 = vsyncpa [#allocation10], 1
    %s890 = scalar_lea.sflag [#allocation10], 1
    %891 = vsyncpa %s890, 1
    %892 = vsyncpa [#allocation5], 1
    %s893 = scalar_lea.sflag [#allocation5], 1
    %894 = vsyncpa %s893, 1

</llo_original>
